<compile_context>
chip_gen: v7x
topology: tpu7x:2x2x1
jax: 0.10.0
libtpu: 0.0.40
codegen_flags: <defaults>
</compile_context>

<pallas_src>
import functools

import jax
import jax.numpy as jnp
from jax import lax
from jax.experimental import pallas as pl
from jax.experimental.pallas import tpu as pltpu

_NEG_FILL = -1e30          # finite stand-in for -inf (no NaN propagation)
_MIB = 1024 * 1024


def _round_up(x, m):
    return (x + m - 1) // m * m


def _vmem_capacity_bytes():
    """Physical per-core VMEM (64 MiB on v7x, 128 MiB on v5e/v6e)."""
    try:
        info = pltpu.get_tpu_info()
        for name in ("vmem_capacity_bytes", "vmem_size_bytes", "vmem_bytes"):
            cap = getattr(info, name, None)
            if cap:
                return int(cap)
    except Exception:
        pass
    return 64 * _MIB       # conservative fallback (v7x-sized)


def _sdpa_kernel(*refs, inv_temper, has_mask, return_attn, compute_dtype):
    """One (batch, q-tile) grid step.

    refs = q, kT, v, [mask], out, [attn]
      q:    (1, TQ, D)   compute_dtype
      kT:   (1, D,  Lk)  compute_dtype (pre-transposed in wrapper)
      v:    (1, Lk, Dv)  compute_dtype
      mask: (1, TQ, Lk) or (1, 1, Lk) int8, nonzero == masked out
      out:  (1, TQ, Dv)
      attn: (1, TQ, Lk)
    """
    it = iter(refs)
    q_ref, kt_ref, v_ref = next(it), next(it), next(it)
    mask_ref = next(it) if has_mask else None
    out_ref = next(it)
    attn_ref = next(it) if return_attn else None

    # Fold 1/temper into q: TQ*D multiplies instead of TQ*Lk on the scores.
    q = q_ref[0] * inv_temper                                  # (TQ, D)

    # q @ k^T in compute_dtype (bf16 by default), f32 accumulation on the MXU.
    # kT is already (D, Lk): plain (M,K)x(K,N), no transpose feeding the MXU.
    scores = lax.dot_general(
        q, kt_ref[0],
        dimension_numbers=(((1,), (0,)), ((), ())),
        preferred_element_type=jnp.float32,
    )                                                          # (TQ, Lk) f32

    if has_mask:
        scores = jnp.where(mask_ref[0] != 0, _NEG_FILL, scores)

    # numerically-stable softmax over the key axis
    m = jnp.max(scores, axis=-1, keepdims=True)
    e = jnp.exp(scores - m)
    s = jnp.sum(e, axis=-1, keepdims=True)
    attn = e * pl.reciprocal(s, approx=True)                   # EUP slot

    if has_mask:
        # Fully-masked query rows: PyTorch yields NaN; we return zeros instead
        # (explicit, documented). Row is fully masked iff its max is the fill.
        attn = jnp.where(m <= _NEG_FILL * 0.5, 0.0, attn)

    if return_attn:
        attn_ref[0] = attn.astype(attn_ref.dtype)

    out = jnp.dot(attn.astype(compute_dtype), v_ref[0],
                  preferred_element_type=jnp.float32)
    out_ref[0] = out.astype(out_ref.dtype)


def scaled_dot_product_attention(q, k, v, attn_mask=None, d_model=None,
                                 tile_q=128, compute_dtype=jnp.bfloat16,
                                 attn_dtype=None, return_attn=True):
    """Pallas TPU port of HPSG ScaledDotProductAttention.forward.

    Returns (output, attn) like the PyTorch module (eval-mode dropout).
      * Matmuls run in `compute_dtype` (default bf16) with f32 accumulation.
      * `attn` is written back in `attn_dtype` (default: compute_dtype). Pass
        attn_dtype=q.dtype for exact module dtype, or return_attn=False to
        skip the attn writeback entirely (then attn is returned as None).
      * attn_mask may be (B, Lq, Lk) (module semantics, True == masked out)
        or a compact (B, Lk) key-padding mask (broadcast in-kernel).
    """
    B, Lq, D = q.shape
    Bk, Lk, Dk = k.shape
    Bv, Lkv, Dv = v.shape
    assert Bk == B and Bv == B and Dk == D and Lkv == Lk
    if d_model is None:
        d_model = D
    inv_temper = 1.0 / (float(d_model) ** 0.5)

    compute_dtype = jnp.dtype(compute_dtype)
    out_dtype = jnp.dtype(q.dtype)
    attn_dtype = compute_dtype if attn_dtype is None else jnp.dtype(attn_dtype)

    has_mask = attn_mask is not None
    mask_is_full = False
    if has_mask:
        if attn_mask.ndim == 3:
            assert attn_mask.shape == (B, Lq, Lk), (
                "Attention mask shape {} mismatch with Attention logit tensor "
                "shape {}.".format(attn_mask.shape, (B, Lq, Lk)))
            mask_is_full = True
        else:
            assert attn_mask.shape == (B, Lk), attn_mask.shape

    # --- query tiling --------------------------------------------------------
    # bf16 packs 16 rows / sublane-pair; an int8 (1, tq, Lk) mask block wants
    # tq to be a multiple of 32 to avoid sub-tile relayout.
    sub = 8 if compute_dtype.itemsize == 4 else 16
    if mask_is_full:
        sub = 32
    tq = min(int(tile_q), _round_up(Lq, sub))
    tq = _round_up(tq, sub)
    lq_pad = _round_up(Lq, tq)

    # --- operand prep (one fused XLA pass each, no per-tile relayout) --------
    qc = q.astype(compute_dtype)
    if lq_pad != Lq:
        qc = jnp.pad(qc, ((0, 0), (0, lq_pad - Lq), (0, 0)))
    ktc = jnp.swapaxes(k, 1, 2).astype(compute_dtype)          # (B, D, Lk)
    vc = v.astype(compute_dtype)                               # (B, Lk, Dv)
    inputs = [qc, ktc, vc]

    # --- VMEM budget (generation-aware) --------------------------------------
    csize = compute_dtype.itemsize
    kv_block_bytes = (D * Lk + Lk * Dv) * csize
    per_tile_bytes = (
        tq * D * csize
        + tq * Dv * out_dtype.itemsize
        + (tq * Lk * attn_dtype.itemsize if return_attn else 0)
        + ((tq if mask_is_full else 1) * Lk if has_mask else 0)
    )
    softmax_scratch = 4 * tq * Lk * 4        # scores/exp/attn f32 intermediates
    vmem_cap = _vmem_capacity_bytes()
    vmem_limit = (vmem_cap * 3) // 4         # ≈48 MiB v7x, ≈96 MiB v5e/v6e

    base = 2 * per_tile_bytes + softmax_scratch
    # K/V block index only changes at batch boundaries; if double-buffering
    # them is what blows the budget (v7x), fall back to a single buffer.
    single_buffer_kv = base + 2 * kv_block_bytes > (vmem_limit * 7) // 10
    kv_buffers = 1 if single_buffer_kv else 2
    total_vmem = base + kv_buffers * kv_block_bytes
    if total_vmem > vmem_limit:
        # TODO(synk): Lk tiling + online (flash-style) softmax for huge Lk.
        raise ValueError(
            "K/V-resident attention needs ~%.1f MiB VMEM but only ~%.1f MiB "
            "is budgeted on this TPU; reduce Lk / tile_q or add Lk tiling."
            % (total_vmem / _MIB, vmem_limit / _MIB))
    kv_spec_kwargs = {"pipeline_mode": pl.Buffered(1)} if single_buffer_kv else {}

    # --- specs ---------------------------------------------------------------
    in_specs = [
        pl.BlockSpec((1, tq, D), lambda b, i: (b, i, 0)),                    # q
        pl.BlockSpec((1, D, Lk), lambda b, i: (b, 0, 0), **kv_spec_kwargs),  # k^T
        pl.BlockSpec((1, Lk, Dv), lambda b, i: (b, 0, 0), **kv_spec_kwargs), # v
    ]
    if has_mask:
        m8 = attn_mask.astype(jnp.int8)      # 4x smaller DMA than int32
        if mask_is_full:
            if lq_pad != Lq:
                m8 = jnp.pad(m8, ((0, 0), (0, lq_pad - Lq), (0, 0)))
            in_specs.append(pl.BlockSpec((1, tq, Lk), lambda b, i: (b, i, 0)))
        else:
            m8 = m8.reshape(B, 1, Lk)        # key-padding mask, broadcast in-kernel
            in_specs.append(pl.BlockSpec((1, 1, Lk), lambda b, i: (b, 0, 0)))
        inputs.append(m8)

    out_shapes = [jax.ShapeDtypeStruct((B, lq_pad, Dv), out_dtype)]
    out_specs = [pl.BlockSpec((1, tq, Dv), lambda b, i: (b, i, 0))]
    if return_attn:
        # Last dim is the real Lk (full-dim block is legal) -> no wrapper-side
        # re-copy of the largest array just to strip key padding.
        out_shapes.append(jax.ShapeDtypeStruct((B, lq_pad, Lk), attn_dtype))
        out_specs.append(pl.BlockSpec((1, tq, Lk), lambda b, i: (b, i, 0)))

    # Megacore: shard the batch axis across cores so each core streams each
    # K/V exactly once (K/V are reused across all q tiles of a batch element).
    dim_sem = ("parallel", "arbitrary") if B > 1 else ("arbitrary", "parallel")

    kernel = functools.partial(
        _sdpa_kernel, inv_temper=inv_temper, has_mask=has_mask,
        return_attn=return_attn, compute_dtype=compute_dtype)

    results = pl.pallas_call(
        kernel,
        out_shape=tuple(out_shapes),
        grid_spec=pltpu.PrefetchScalarGridSpec(
            num_scalar_prefetch=0,
            grid=(B, lq_pad // tq),
            in_specs=in_specs,
            out_specs=tuple(out_specs),
        ),
        compiler_params=pltpu.CompilerParams(
            dimension_semantics=dim_sem,
            vmem_limit_bytes=int(vmem_limit),
        ),
    )(*inputs)

    if return_attn:
        out, attn = results
    else:
        (out,) = results
        attn = None

    if lq_pad != Lq:     # only pay a strip pass when Lq didn't tile evenly
        out = out[:, :Lq]
        if attn is not None:
            attn = attn[:, :Lq]
    return out, attn


def _reference(q, k, v, attn_mask, d_model):
    temper = float(d_model) ** 0.5
    scores = jnp.einsum("bqd,bkd->bqk", q, k) / temper
    if attn_mask is not None:
        scores = jnp.where(attn_mask, -jnp.inf, scores)
    attn = jax.nn.softmax(scores, axis=-1)
    out = jnp.einsum("bqk,bkd->bqd", attn, v)
    return out, attn


if __name__ == "__main__":
    key = jax.random.PRNGKey(0)
    B, Lq, Lk, d_model, d_v = 2, 8, 8, 32, 32

    kq, kk, kv, km = jax.random.split(key, 4)
    q = jax.random.normal(kq, (B, Lq, d_model), dtype=jnp.float32)
    k = jax.random.normal(kk, (B, Lk, d_model), dtype=jnp.float32)
    v = jax.random.normal(kv, (B, Lk, d_v), dtype=jnp.float32)
    # Boolean attention mask (True == masked out), like the PyTorch module;
    # keep at least one key unmasked per row so the -inf reference has no NaN.
    attn_mask = jax.random.bernoulli(km, p=0.2, shape=(B, Lq, Lk))
    attn_mask = attn_mask.at[..., 0].set(False)

    ref_out, ref_attn = _reference(q, k, v, attn_mask, d_model)

    # 1) default path: bf16 MXU matmuls + bf16 attn writeback
    out, attn = scaled_dot_product_attention(q, k, v, attn_mask, d_model=d_model)
    out = jax.block_until_ready(out)
    attn = jax.block_until_ready(attn)
    assert out.dtype == q.dtype and attn.dtype == jnp.bfloat16
    assert jnp.allclose(out, ref_out, atol=7e-2, rtol=7e-2)
    assert jnp.allclose(attn.astype(jnp.float32), ref_attn, atol=3e-2, rtol=3e-2)

    # 2) full-precision path (compute/attn in f32) — tight check
    out32, attn32 = scaled_dot_product_attention(
        q, k, v, attn_mask, d_model=d_model,
        compute_dtype=jnp.float32, attn_dtype=jnp.float32)
    out32 = jax.block_until_ready(out32)
    assert jnp.allclose(out32, ref_out, atol=2e-3, rtol=2e-3)
    assert jnp.allclose(attn32, ref_attn, atol=2e-3, rtol=2e-3)

    # 3) no-mask path
    out_nm, attn_nm = scaled_dot_product_attention(q, k, v, None, d_model=d_model)
    out_nm = jax.block_until_ready(out_nm)
    ref_out_nm, ref_attn_nm = _reference(q, k, v, None, d_model)
    assert jnp.allclose(out_nm, ref_out_nm, atol=7e-2, rtol=7e-2)
    assert jnp.allclose(attn_nm.astype(jnp.float32), ref_attn_nm,
                        atol=3e-2, rtol=3e-2)

    # 4) compact (B, Lk) key-padding mask + return_attn=False (no attn writeback)
    key_mask = jnp.zeros((B, Lk), dtype=bool).at[:, Lk - 2:].set(True)
    out_kp, attn_kp = scaled_dot_product_attention(
        q, k, v, key_mask, d_model=d_model, return_attn=False)
    out_kp = jax.block_until_ready(out_kp)
    assert attn_kp is None
    ref_out_kp, _ = _reference(
        q, k, v, jnp.broadcast_to(key_mask[:, None, :], (B, Lq, Lk)), d_model)
    assert jnp.allclose(out_kp, ref_out_kp, atol=7e-2, rtol=7e-2)

    print("KERNEL_OK")
</pallas_src>

<mosaic_0001>
module attributes {stable_mosaic.version = 11 : i64} {
  func.func @_sdpa_kernel(%arg0: i32, %arg1: i32, %arg2: memref<1x32x32xbf16, #tpu.memory_space<vmem>>, %arg3: memref<1x32x8xbf16, #tpu.memory_space<vmem>>, %arg4: memref<1x8x32xbf16, #tpu.memory_space<vmem>>, %arg5: memref<1x32x8xi8, #tpu.memory_space<vmem>>, %arg6: memref<1x32x32xf32, #tpu.memory_space<vmem>>, %arg7: memref<1x32x8xbf16, #tpu.memory_space<vmem>>) attributes {dimension_semantics = [#tpu.dimension_semantics<parallel>, #tpu.dimension_semantics<arbitrary>], iteration_bounds = array<i64: 2, 1>, scalar_prefetch = 0 : i64, scratch_operands = 0 : i64, tpu.core_type = #tpu.core_type<tc>, window_params = [{transform_indices = @transform_0, window_bounds = array<i64: 1, 32, 32>}, {transform_indices = @transform_1, window_bounds = array<i64: 1, 32, 8>}, {transform_indices = @transform_2, window_bounds = array<i64: 1, 8, 32>}, {transform_indices = @transform_3, window_bounds = array<i64: 1, 32, 8>}, {transform_indices = @transform_4, window_bounds = array<i64: 1, 32, 32>}, {transform_indices = @transform_5, window_bounds = array<i64: 1, 32, 8>}]} {
    %c0 = arith.constant 0 : index
    %c0_0 = arith.constant 0 : index
    %c0_1 = arith.constant 0 : index
    %0 = vector.load %arg2[%c0, %c0_0, %c0_1] : memref<1x32x32xbf16, #tpu.memory_space<vmem>>, vector<1x32x32xbf16>
    %1 = vector.shape_cast %0 : vector<1x32x32xbf16> to vector<32x32xbf16>
    %cst = arith.constant 1.767580e-01 : bf16
    %2 = vector.broadcast %cst : bf16 to vector<32x32xbf16>
    %3 = arith.mulf %1, %2 : vector<32x32xbf16>
    %c0_2 = arith.constant 0 : index
    %c0_3 = arith.constant 0 : index
    %c0_4 = arith.constant 0 : index
    %4 = vector.load %arg3[%c0_2, %c0_3, %c0_4] : memref<1x32x8xbf16, #tpu.memory_space<vmem>>, vector<1x32x8xbf16>
    %5 = vector.shape_cast %4 : vector<1x32x8xbf16> to vector<32x8xbf16>
    %cst_5 = arith.constant dense<0.000000e+00> : vector<32x8xf32>
    %6 = tpu.matmul %3, %5, %cst_5 {dimension_numbers = #tpu.dot_dimension_numbers<[1], [0], [0], [1], [0, 0, 1, 1], [], []>} : vector<32x32xbf16>, vector<32x8xbf16>, vector<32x8xf32> -> vector<32x8xf32>
    %c0_6 = arith.constant 0 : index
    %c0_7 = arith.constant 0 : index
    %c0_8 = arith.constant 0 : index
    %7 = vector.load %arg5[%c0_6, %c0_7, %c0_8] : memref<1x32x8xi8, #tpu.memory_space<vmem>>, vector<1x32x8xi8>
    %8 = vector.shape_cast %7 : vector<1x32x8xi8> to vector<32x8xi8>
    %c0_i8 = arith.constant 0 : i8
    %9 = vector.broadcast %c0_i8 : i8 to vector<32x8xi8>
    %10 = arith.cmpi ne, %8, %9 : vector<32x8xi8>
    %cst_9 = arith.constant -1.000000e+30 : f32
    %11 = vector.broadcast %cst_9 : f32 to vector<32x8xf32>
    %12 = arith.select %10, %11, %6 : vector<32x8xi1>, vector<32x8xf32>
    %cst_10 = arith.constant dense<0xFF800000> : vector<32xf32>
    %13 = vector.multi_reduction <maximumf>, %12, %cst_10 [1] : vector<32x8xf32> to vector<32xf32>
    %14 = vector.shape_cast %13 : vector<32xf32> to vector<32x1xf32>
    %15 = vector.broadcast %14 : vector<32x1xf32> to vector<32x8xf32>
    %16 = arith.subf %12, %15 : vector<32x8xf32>
    %17 = math.exp %16 : vector<32x8xf32>
    %cst_11 = arith.constant dense<0.000000e+00> : vector<32xf32>
    %18 = vector.multi_reduction <add>, %17, %cst_11 [1] : vector<32x8xf32> to vector<32xf32>
    %19 = vector.shape_cast %18 : vector<32xf32> to vector<32x1xf32>
    %20 = tpu.reciprocal %19 {approx = true} : vector<32x1xf32> -> vector<32x1xf32>
    %21 = vector.broadcast %20 : vector<32x1xf32> to vector<32x8xf32>
    %22 = arith.mulf %17, %21 : vector<32x8xf32>
    %cst_12 = arith.constant -5.000000e+29 : f32
    %23 = vector.broadcast %cst_12 : f32 to vector<32x1xf32>
    %24 = arith.cmpf ole, %14, %23 : vector<32x1xf32>
    %cst_13 = arith.constant 0.000000e+00 : f32
    %25 = vector.shape_cast %24 : vector<32x1xi1> to vector<32x1xi1>
    %26 = vector.broadcast %25 : vector<32x1xi1> to vector<32x8xi1>
    %27 = vector.broadcast %cst_13 : f32 to vector<32x8xf32>
    %28 = arith.select %26, %27, %22 : vector<32x8xi1>, vector<32x8xf32>
    %29 = arith.truncf %28 : vector<32x8xf32> to vector<32x8xbf16>
    %c0_14 = arith.constant 0 : index
    %c0_15 = arith.constant 0 : index
    %c0_16 = arith.constant 0 : index
    %30 = vector.load %arg7[%c0_14, %c0_15, %c0_16] : memref<1x32x8xbf16, #tpu.memory_space<vmem>>, vector<1x32x8xbf16>
    %31 = vector.shape_cast %30 : vector<1x32x8xbf16> to vector<32x8xbf16>
    %32 = vector.shape_cast %29 : vector<32x8xbf16> to vector<1x32x8xbf16>
    tpu.vector_store %arg7[%c0_14, %c0_15, %c0_16], %32 {strides = array<i32>} : memref<1x32x8xbf16, #tpu.memory_space<vmem>>, vector<1x32x8xbf16>,
    %33 = arith.truncf %28 : vector<32x8xf32> to vector<32x8xbf16>
    %c0_17 = arith.constant 0 : index
    %c0_18 = arith.constant 0 : index
    %c0_19 = arith.constant 0 : index
    %34 = vector.load %arg4[%c0_17, %c0_18, %c0_19] : memref<1x8x32xbf16, #tpu.memory_space<vmem>>, vector<1x8x32xbf16>
    %35 = vector.shape_cast %34 : vector<1x8x32xbf16> to vector<8x32xbf16>
    %cst_20 = arith.constant dense<0.000000e+00> : vector<32x32xf32>
    %36 = tpu.matmul %33, %35, %cst_20 {dimension_numbers = #tpu.dot_dimension_numbers<[1], [0], [0], [1], [0, 0, 1, 1], [], []>} : vector<32x8xbf16>, vector<8x32xbf16>, vector<32x32xf32> -> vector<32x32xf32>
    %c0_21 = arith.constant 0 : index
    %c0_22 = arith.constant 0 : index
    %c0_23 = arith.constant 0 : index
    %37 = vector.load %arg6[%c0_21, %c0_22, %c0_23] : memref<1x32x32xf32, #tpu.memory_space<vmem>>, vector<1x32x32xf32>
    %38 = vector.shape_cast %37 : vector<1x32x32xf32> to vector<32x32xf32>
    %39 = vector.shape_cast %36 : vector<32x32xf32> to vector<1x32x32xf32>
    tpu.vector_store %arg6[%c0_21, %c0_22, %c0_23], %39 {strides = array<i32>} : memref<1x32x32xf32, #tpu.memory_space<vmem>>, vector<1x32x32xf32>,
    return
  }
  func.func @transform_0(%arg0: i32, %arg1: i32) -> (i32, i32, i32) {
    %c0_i32 = arith.constant 0 : i32
    %c0_i32_0 = arith.constant 0 : i32
    return %arg0, %arg1, %c0_i32 : i32, i32, i32
  }
  func.func @transform_1(%arg0: i32, %arg1: i32) -> (i32, i32, i32) {
    %c0_i32 = arith.constant 0 : i32
    %c0_i32_0 = arith.constant 0 : i32
    %c0_i32_1 = arith.constant 0 : i32
    return %arg0, %c0_i32, %c0_i32_0 : i32, i32, i32
  }
  func.func @transform_2(%arg0: i32, %arg1: i32) -> (i32, i32, i32) {
    %c0_i32 = arith.constant 0 : i32
    %c0_i32_0 = arith.constant 0 : i32
    %c0_i32_1 = arith.constant 0 : i32
    return %arg0, %c0_i32, %c0_i32_0 : i32, i32, i32
  }
  func.func @transform_3(%arg0: i32, %arg1: i32) -> (i32, i32, i32) {
    %c0_i32 = arith.constant 0 : i32
    %c0_i32_0 = arith.constant 0 : i32
    return %arg0, %arg1, %c0_i32 : i32, i32, i32
  }
  func.func @transform_4(%arg0: i32, %arg1: i32) -> (i32, i32, i32) {
    %c0_i32 = arith.constant 0 : i32
    %c0_i32_0 = arith.constant 0 : i32
    return %arg0, %arg1, %c0_i32 : i32, i32, i32
  }
  func.func @transform_5(%arg0: i32, %arg1: i32) -> (i32, i32, i32) {
    %c0_i32 = arith.constant 0 : i32
    %c0_i32_0 = arith.constant 0 : i32
    return %arg0, %arg1, %c0_i32 : i32, i32, i32
  }
}

</mosaic_0001>

<llo_original>
// kernel: tpu_custom_call.1
$region0: #{tpu_custom_call.1}
  #allocation0 [shape = 'u32[]', space=smem, size = 0x4, offset = 0x4, fixed_abs, tag = 'smem constant byte address 0x4 - core index']
  #allocation1 [shape = 'u32[144,128]{1,0:T(1,128)}', space=vmem, size = 0x12000, scoped, tag = 'internal scratch']
  %s0 = inlined_call_operand.vmem [shape: bf16[2,32,32], index: 0, kind: input, shape index: {}]
  %s1 = inlined_call_operand.vmem [shape: bf16[2,32,8], index: 1, kind: input, shape index: {}]
  %s2 = inlined_call_operand.vmem [shape: bf16[2,8,32], index: 2, kind: input, shape index: {}]
  %s3 = inlined_call_operand.vmem [shape: s8[2,32,8], index: 3, kind: input, shape index: {}]
  %s4 = inlined_call_operand.hbm [shape: f32[2,32,32], index: 4, kind: output, shape index: {0}]
  %s5 = inlined_call_operand.vmem [shape: bf16[2,32,8], index: 5, kind: output, shape index: {1}]
  %6 = xla_tuple %s4, %s5
  %s7 = sld [smem:[#allocation0]]
  $region57: #{tpu_custom_call.1} parent=0
    _
  %s9 = ssub.s32 1, %s7
  %s10 = scalar_select 0, %s9, %s7
  $region1: #{tpu_custom_call.1} parent=0
    #allocation2 [shape = 'u8[32768]{0}', space=vmem, size = 0x8000, scoped, tag = 'output window, operand 0']
    #allocation3 [shape = 's32[2]{0}', space=sflag, size = 0x8, scoped, tag = 'scoped memory for tpu_custom_call.1']
    %11 = vsyncpa [#allocation3], 0
    %s12 = scalar_lea.sflag [#allocation3], 1
    %13 = vsyncpa %s12, 0
    loop: start=0, step=1, limit=4
    $region2: #{tpu_custom_call.1} parent=1 // loop_pre_header
      _
    $region3: #{tpu_custom_call.1} parent=1 // loop_header
      %s15 = sphi 0, %s19
      %p16 = scmp.ge.s32.totalorder %s15, 4
      %s22 = sphi 0, %s34
      %s23 = sphi 0, %s30
      %s24 = sphi 0, %s22
      %s25 = sphi 0, %s23
      %s26 = sphi 0, %s24
      %s27 = sphi 0, %s25
      %s39 = sphi 0, %s41
      %s42 = sphi 0, %s39
      %s43 = sphi 0, %s42
      %s59 = sphi 0, %s43
      %s65 = sphi 0, %s67
      %s68 = sphi 0, %s65
      %s69 = sphi 0, %s68
      %s85 = sphi 0, %s69
      %s91 = sphi 0, %s93
      %s94 = sphi 0, %s91
      %s95 = sphi 0, %s94
      %s111 = sphi 0, %s95
      %s119 = sphi 0, %s121
      %s122 = sphi 0, %s119
      %s123 = sphi 0, %s122
      %s139 = sphi 0, %s123
      %s147 = sphi 0, %s149
      %s150 = sphi 0, %s147
      %s151 = sphi 0, %s150
      %s167 = sphi 0, %s151
      %s175 = sphi 0, %s177
      %s178 = sphi 0, %s175
      %s179 = sphi 0, %s178
      %s195 = sphi 0, %s179
    $region4: #{tpu_custom_call.1} parent=1 // loop_header_branch
      %18 = sbr.rel (%p16) target = $region8
    $region5: #{tpu_custom_call.1} parent=1 // loop_body
      %s20 = ssub.s32 %s15, 1
      %s21 = ssub.s32 %s15, 2
      %s28 = sadd.s32 1, %s23
      %p29 = scmp.ge.s32.totalorder %s28, 1
      %s30 = scalar_select %p29, 0, %s28
      %s31 = sadd.s32 1, %s22
      %s32 = scalar_select %p29, %s31, %s22
      %p33 = scmp.ge.s32.totalorder %s32, 2
      %s34 = scalar_select %p33, 0, %s32
      %s35 = ssub.s32 %s22, %s34
      %s36 = ssub.s32 %s23, %s30
      %s37 = sor.u32 %s35, %s36
      %p38 = scmp.eq.s32.totalorder %s37, 0
      %s40 = sadd.s32 %s39, 1
      %s41 = scalar_select %p38, %s39, %s40
      %p44 = pneg %p38
      %p45 = scmp.eq.s32.totalorder %s15, 1
      %p46 = por %p44, %p45
      %p47 = scmp.ne.s32.totalorder %s39, %s42
      %p48 = scmp.eq.s32.totalorder %s15, 0
      %p49 = por %p47, %p48
      %p50 = scmp.ne.s32.totalorder %s39, %s42
      %p51 = scmp.eq.s32.totalorder %s20, 1
      %p52 = por %p50, %p51
      %p53 = scmp.ne.s32.totalorder %s42, %s43
      %p54 = scmp.eq.s32.totalorder %s20, 0
      %p55 = por %p53, %p54
      %p56 = scmp.ne.s32.totalorder %s42, %s43
      %p57 = scmp.eq.s32.totalorder %s21, 1
      %p58 = por %p56, %p57
      %p60 = scmp.ne.s32.totalorder %s43, %s59
      %p61 = scmp.eq.s32.totalorder %s21, 0
      %p62 = por %p60, %p61
      %s63 = ssub.s32 %s22, %s34
      %p64 = scmp.eq.s32.totalorder %s63, 0
      %s66 = sadd.s32 %s65, 1
      %s67 = scalar_select %p64, %s65, %s66
      %p70 = pneg %p64
      %p71 = scmp.eq.s32.totalorder %s15, 1
      %p72 = por %p70, %p71
      %p73 = scmp.ne.s32.totalorder %s65, %s68
      %p74 = scmp.eq.s32.totalorder %s15, 0
      %p75 = por %p73, %p74
      %p76 = scmp.ne.s32.totalorder %s65, %s68
      %p77 = scmp.eq.s32.totalorder %s20, 1
      %p78 = por %p76, %p77
      %p79 = scmp.ne.s32.totalorder %s68, %s69
      %p80 = scmp.eq.s32.totalorder %s20, 0
      %p81 = por %p79, %p80
      %p82 = scmp.ne.s32.totalorder %s68, %s69
      %p83 = scmp.eq.s32.totalorder %s21, 1
      %p84 = por %p82, %p83
      %p86 = scmp.ne.s32.totalorder %s69, %s85
      %p87 = scmp.eq.s32.totalorder %s21, 0
      %p88 = por %p86, %p87
      %s89 = ssub.s32 %s22, %s34
      %p90 = scmp.eq.s32.totalorder %s89, 0
      %s92 = sadd.s32 %s91, 1
      %s93 = scalar_select %p90, %s91, %s92
      %p96 = pneg %p90
      %p97 = scmp.eq.s32.totalorder %s15, 1
      %p98 = por %p96, %p97
      %p99 = scmp.ne.s32.totalorder %s91, %s94
      %p100 = scmp.eq.s32.totalorder %s15, 0
      %p101 = por %p99, %p100
      %p102 = scmp.ne.s32.totalorder %s91, %s94
      %p103 = scmp.eq.s32.totalorder %s20, 1
      %p104 = por %p102, %p103
      %p105 = scmp.ne.s32.totalorder %s94, %s95
      %p106 = scmp.eq.s32.totalorder %s20, 0
      %p107 = por %p105, %p106
      %p108 = scmp.ne.s32.totalorder %s94, %s95
      %p109 = scmp.eq.s32.totalorder %s21, 1
      %p110 = por %p108, %p109
      %p112 = scmp.ne.s32.totalorder %s95, %s111
      %p113 = scmp.eq.s32.totalorder %s21, 0
      %p114 = por %p112, %p113
      %s115 = ssub.s32 %s22, %s34
      %s116 = ssub.s32 %s23, %s30
      %s117 = sor.u32 %s115, %s116
      %p118 = scmp.eq.s32.totalorder %s117, 0
      %s120 = sadd.s32 %s119, 1
      %s121 = scalar_select %p118, %s119, %s120
      %p124 = pneg %p118
      %p125 = scmp.eq.s32.totalorder %s15, 1
      %p126 = por %p124, %p125
      %p127 = scmp.ne.s32.totalorder %s119, %s122
      %p128 = scmp.eq.s32.totalorder %s15, 0
      %p129 = por %p127, %p128
      %p130 = scmp.ne.s32.totalorder %s119, %s122
      %p131 = scmp.eq.s32.totalorder %s20, 1
      %p132 = por %p130, %p131
      %p133 = scmp.ne.s32.totalorder %s122, %s123
      %p134 = scmp.eq.s32.totalorder %s20, 0
      %p135 = por %p133, %p134
      %p136 = scmp.ne.s32.totalorder %s122, %s123
      %p137 = scmp.eq.s32.totalorder %s21, 1
      %p138 = por %p136, %p137
      %p140 = scmp.ne.s32.totalorder %s123, %s139
      %p141 = scmp.eq.s32.totalorder %s21, 0
      %p142 = por %p140, %p141
      %s143 = ssub.s32 %s22, %s34
      %s144 = ssub.s32 %s23, %s30
      %s145 = sor.u32 %s143, %s144
      %p146 = scmp.eq.s32.totalorder %s145, 0
      %s148 = sadd.s32 %s147, 1
      %s149 = scalar_select %p146, %s147, %s148
      %p152 = pneg %p146
      %p153 = scmp.eq.s32.totalorder %s15, 1
      %p154 = por %p152, %p153
      %p155 = scmp.ne.s32.totalorder %s147, %s150
      %p156 = scmp.eq.s32.totalorder %s15, 0
      %p157 = por %p155, %p156
      %p158 = scmp.ne.s32.totalorder %s147, %s150
      %p159 = scmp.eq.s32.totalorder %s20, 1
      %p160 = por %p158, %p159
      %p161 = scmp.ne.s32.totalorder %s150, %s151
      %p162 = scmp.eq.s32.totalorder %s20, 0
      %p163 = por %p161, %p162
      %p164 = scmp.ne.s32.totalorder %s150, %s151
      %p165 = scmp.eq.s32.totalorder %s21, 1
      %p166 = por %p164, %p165
      %p168 = scmp.ne.s32.totalorder %s151, %s167
      %p169 = scmp.eq.s32.totalorder %s21, 0
      %p170 = por %p168, %p169
      %s171 = ssub.s32 %s22, %s34
      %s172 = ssub.s32 %s23, %s30
      %s173 = sor.u32 %s171, %s172
      %p174 = scmp.eq.s32.totalorder %s173, 0
      %s176 = sadd.s32 %s175, 1
      %s177 = scalar_select %p174, %s175, %s176
      %p180 = pneg %p174
      %p181 = scmp.eq.s32.totalorder %s15, 1
      %p182 = por %p180, %p181
      %p183 = scmp.ne.s32.totalorder %s175, %s178
      %p184 = scmp.eq.s32.totalorder %s15, 0
      %p185 = por %p183, %p184
      %p186 = scmp.ne.s32.totalorder %s175, %s178
      %p187 = scmp.eq.s32.totalorder %s20, 1
      %p188 = por %p186, %p187
      %p189 = scmp.ne.s32.totalorder %s178, %s179
      %p190 = scmp.eq.s32.totalorder %s20, 0
      %p191 = por %p189, %p190
      %p192 = scmp.ne.s32.totalorder %s178, %s179
      %p193 = scmp.eq.s32.totalorder %s21, 1
      %p194 = por %p192, %p193
      %p196 = scmp.ne.s32.totalorder %s179, %s195
      %p197 = scmp.eq.s32.totalorder %s21, 0
      %p198 = por %p196, %p197
      %p199 = scmp.le.s32.totalorder 1, %s15
      %p200 = scmp.lt.s32.totalorder %s15, 3
      %p201 = pnand %p199, %p200
      %p202 = pneg %p201
      // Predicated region
      $region9: #{tpu_custom_call.1} parent=5 // pred_check
        _
      $region10: #{tpu_custom_call.1} parent=5 // pred_check_branch
        %204 = sbr.rel (%p201) target = $region12
      $region11: #{tpu_custom_call.1} parent=5 // pred_region
        %s205 = ssub.s32 %s15, 1
      $region12: #{tpu_custom_call.1} parent=5 // pred_fallthru
        _
      %p206 = scmp.lt.s32.totalorder %s15, 2
      // Predicated region
      $region13: #{tpu_custom_call.1} parent=5 // pred_check
        %p207 = pneg %p206
      $region14: #{tpu_custom_call.1} parent=5 // pred_check_branch
        %209 = sbr.rel (%p207) target = $region16
      $region15: #{tpu_custom_call.1} parent=5 // pred_region
        // Predicated region
        $region17: #{tpu_custom_call.1} parent=15 // pred_check
          %p210 = pneg %p49
        $region18: #{tpu_custom_call.1} parent=15 // pred_check_branch
          %212 = sbr.rel (%p210) target = $region20
        $region19: #{tpu_custom_call.1} parent=15 // pred_region
          %s213 = smul.u32 4, %s23
          %p214 = scmp.lt.s32.totalorder %s22, 1
          %s215 = scalar_select %p214, %s22, 1
          %p216 = scmp.lt.s32.totalorder %s213, 3
          %s217 = scalar_select %p216, %s213, 3
          %s218 = smul.addr %s215, 4
          %s219 = sadd.s32 %s217, %s218
          %s220 = smul.addr %s219, 4
          %s221 = scalar_lea.vmem %s0, %s220
          %s222 = smul.u32 4, %s23
        $region20: #{tpu_custom_call.1} parent=15 // pred_fallthru
          _
        // Predicated region
        $region21: #{tpu_custom_call.1} parent=15 // pred_check
          %p223 = pneg %p75
        $region22: #{tpu_custom_call.1} parent=15 // pred_check_branch
          %225 = sbr.rel (%p223) target = $region24
        $region23: #{tpu_custom_call.1} parent=15 // pred_region
          %p226 = scmp.lt.s32.totalorder %s22, 1
          %s227 = scalar_select %p226, %s22, 1
          %s228 = smul.addr %s227, 4
          %s229 = smul.addr %s228, 4
          %s230 = scalar_lea.vmem %s1, %s229
        $region24: #{tpu_custom_call.1} parent=15 // pred_fallthru
          _
        // Predicated region
        $region25: #{tpu_custom_call.1} parent=15 // pred_check
          %p231 = pneg %p101
        $region26: #{tpu_custom_call.1} parent=15 // pred_check_branch
          %233 = sbr.rel (%p231) target = $region28
        $region27: #{tpu_custom_call.1} parent=15 // pred_region
          %p234 = scmp.lt.s32.totalorder %s22, 1
          %s235 = scalar_select %p234, %s22, 1
          %s236 = smul.addr %s235, 4
          %s237 = scalar_lea.vmem %s2, %s236
        $region28: #{tpu_custom_call.1} parent=15 // pred_fallthru
          _
        // Predicated region
        $region29: #{tpu_custom_call.1} parent=15 // pred_check
          %p238 = pneg %p129
        $region30: #{tpu_custom_call.1} parent=15 // pred_check_branch
          %240 = sbr.rel (%p238) target = $region32
        $region31: #{tpu_custom_call.1} parent=15 // pred_region
          %s241 = smul.u32 4, %s23
          %p242 = scmp.lt.s32.totalorder %s22, 1
          %s243 = scalar_select %p242, %s22, 1
          %p244 = scmp.lt.s32.totalorder %s241, 3
          %s245 = scalar_select %p244, %s241, 3
          %s246 = smul.addr %s243, 4
          %s247 = sadd.s32 %s245, %s246
          %s248 = smul.addr %s247, 2
          %s249 = scalar_lea.vmem %s3, %s248
          %s250 = smul.u32 4, %s23
        $region32: #{tpu_custom_call.1} parent=15 // pred_fallthru
          _
      $region16: #{tpu_custom_call.1} parent=5 // pred_fallthru
        _
      %p251 = scmp.le.s32.totalorder 1, %s15
      %p252 = scmp.lt.s32.totalorder %s15, 3
      %p253 = pnand %p251, %p252
      %p254 = pneg %p253
      // Predicated region
      $region33: #{tpu_custom_call.1} parent=5 // pred_check
        _
      $region34: #{tpu_custom_call.1} parent=5 // pred_check_branch
        %256 = sbr.rel (%p253) target = $region36
      $region35: #{tpu_custom_call.1} parent=5 // pred_region
        %s257 = ssub.s32 %s15, 1
        %s258 = smul.u32 4, %s25
        %p259 = scmp.lt.s32.totalorder %s24, 1
        %s260 = scalar_select %p259, %s24, 1
        %p261 = scmp.lt.s32.totalorder %s258, 3
        %s262 = scalar_select %p261, %s258, 3
        %s263 = smul.addr %s260, 4
        %s264 = sadd.s32 %s262, %s263
        %s265 = smul.addr %s264, 4
        %s266 = scalar_lea.vmem %s0, %s265
        %p267 = pneg %p55
        %p268 = pneg %p52
        %p269 = scmp.lt.s32.totalorder %s24, 1
        %s270 = scalar_select %p269, %s24, 1
        %s271 = smul.addr %s270, 4
        %s272 = smul.addr %s271, 4
        %s273 = scalar_lea.vmem %s1, %s272
        %p274 = pneg %p81
        %p275 = pneg %p78
        %p276 = scmp.lt.s32.totalorder %s24, 1
        %s277 = scalar_select %p276, %s24, 1
        %s278 = smul.addr %s277, 4
        %s279 = scalar_lea.vmem %s2, %s278
        %p280 = pneg %p107
        %p281 = pneg %p104
        %s282 = smul.u32 4, %s25
        %p283 = scmp.lt.s32.totalorder %s24, 1
        %s284 = scalar_select %p283, %s24, 1
        %p285 = scmp.lt.s32.totalorder %s282, 3
        %s286 = scalar_select %p285, %s282, 3
        %s287 = smul.addr %s284, 4
        %s288 = sadd.s32 %s286, %s287
        %s289 = smul.addr %s288, 2
        %s290 = scalar_lea.vmem %s3, %s289
        %p291 = pneg %p135
        %p292 = pneg %p132
        %p293 = pneg %p163
        %p294 = pneg %p160
        %s295 = sand.u32 %s150, 1
        %s296 = scalar_lea.sflag [#allocation3], %s295
        %s297 = sand.u32 %s150, 1
        %s298 = smul.addr %s297, 32
        %s299 = scalar_lea.vmem [#allocation2], %s298
        %p300 = pneg %p191
        %p301 = pneg %p188
        %s302 = smul.u32 4, %s25
        %p303 = scmp.lt.s32.totalorder %s24, 1
        %s304 = scalar_select %p303, %s24, 1
        %p305 = scmp.lt.s32.totalorder %s302, 3
        %s306 = scalar_select %p305, %s302, 3
        %s307 = smul.addr %s304, 4
        %s308 = sadd.s32 %s306, %s307
        %s309 = smul.addr %s308, 4
        %s310 = scalar_lea.vmem %s5, %s309
        %s311 = smul.u32 4, %s25
        %p312 = scmp.lt.s32.totalorder %s24, 1
        %s313 = scalar_select %p312, %s24, 1
        %p314 = scmp.lt.s32.totalorder %s311, 3
        %s315 = scalar_select %p314, %s311, 3
        %s316 = smul.addr %s313, 4
        %s317 = sadd.s32 %s315, %s316
        %s318 = smul.addr %s317, 4
        %s319 = scalar_lea.vmem %s0, %s318
        %s320 = smul.u32 4, %s25
        %p321 = scmp.lt.s32.totalorder %s24, 1
        %s322 = scalar_select %p321, %s24, 1
        %s323 = smul.addr %s322, 4
        %s324 = smul.addr %s323, 4
        %s325 = scalar_lea.vmem %s1, %s324
        %p326 = scmp.lt.s32.totalorder %s24, 1
        %s327 = scalar_select %p326, %s24, 1
        %s328 = smul.addr %s327, 4
        %s329 = scalar_lea.vmem %s2, %s328
        %s330 = smul.u32 4, %s25
        %p331 = scmp.lt.s32.totalorder %s24, 1
        %s332 = scalar_select %p331, %s24, 1
        %p333 = scmp.lt.s32.totalorder %s330, 3
        %s334 = scalar_select %p333, %s330, 3
        %s335 = smul.addr %s332, 4
        %s336 = sadd.s32 %s334, %s335
        %s337 = smul.addr %s336, 2
        %s338 = scalar_lea.vmem %s3, %s337
        %s339 = smul.u32 4, %s25
        %s340 = smul.u32 4, %s25
        %s341 = smul.u32 4, %s25
        %p342 = scmp.lt.s32.totalorder %s24, 1
        %s343 = scalar_select %p342, %s24, 1
        %p344 = scmp.lt.s32.totalorder %s341, 3
        %s345 = scalar_select %p344, %s341, 3
        %s346 = smul.addr %s343, 4
        %s347 = sadd.s32 %s345, %s346
        %s348 = smul.addr %s347, 4
        %s349 = scalar_lea.vmem %s5, %s348
        %s350 = smul.u32 4, %s25
        %v355 = vld [vmem:[%s319] sm:$0xf]
        %v356 = vld [vmem:[%s319 + $0x4] sm:$0xf]
        %v357 = vld [vmem:[%s319 + $0x8] sm:$0xf]
        %v358 = vld [vmem:[%s319 + $0xc] sm:$0xf]
        %v359 = vmul.bf16 %v355, 1043676725
        %v360 = vmul.bf16 %v356, 1043676725
        %v361 = vmul.bf16 %v357, 1043676725
        %v362 = vmul.bf16 %v358, 1043676725
        %v363 = vld [vmem:[%s325] sm:$0xf]
        %v364 = vld [vmem:[%s325 + $0x4] sm:$0xf]
        %v365 = vld [vmem:[%s325 + $0x8] sm:$0xf]
        %v366 = vld [vmem:[%s325 + $0xc] sm:$0xf]
        %v371 = vunpack.c.l.b16 %v359
        %v372 = vunpack.c.l.b16 %v360
        %v373 = vunpack.c.l.b16 %v361
        %v374 = vunpack.c.l.b16 %v362
        %v375 = vpack.c.b16 %v372, %v371
        %v376 = vpack.c.b16 %v374, %v373
        %v381 = vunpack.c.l.b16 %v363
        %v382 = vunpack.c.l.b16 %v364
        %v383 = vunpack.c.l.b16 %v365
        %v384 = vunpack.c.l.b16 %v366
        %v385 = vpack.c.b16 %v382, %v381
        %v386 = vpack.c.b16 %v384, %v383
        %vm389 = vcmask 261120
        %v391 = vsel %vm389, %v375, 0
        %v394 = vsel %vm389, %v376, 0
        %396 = vmatprep.subr.bf16.mxu0 0
        %397 = vmatpush1.bf16.msra.mxu0 %v385
        %398 = vmatprep.subr.bf16.mxu0 0
        %399 = vmatpush1.bf16.msra.mxu0 %v386
        %400 = vmatprep.subr.bf16.mxu0 0
        %401 = vmatpush1.bf16.msra.mxu0 0
        %402 = vmatprep.subr.bf16.mxu0 0
        %403 = vmatpush1.bf16.msra.mxu0 0
        %404 = vmatprep.subr.bf16.mxu0 0
        %405 = vmatpush1.bf16.msra.mxu0 0
        %406 = vmatprep.subr.bf16.mxu0 0
        %407 = vmatpush1.bf16.msra.mxu0 0
        %408 = vmatprep.subr.bf16.mxu0 0
        %409 = vmatpush1.bf16.msra.mxu0 0
        %410 = vmatprep.subr.bf16.mxu0 0
        %411 = vmatpush1.bf16.msra.mxu0 0
        %412 = vmatprep.subr.bf16.mxu0 0
        %413 = vmatpush1.bf16.msra.mxu0 0
        %414 = vmatprep.subr.bf16.mxu0 0
        %415 = vmatpush1.bf16.msra.mxu0 0
        %416 = vmatprep.subr.bf16.mxu0 0
        %417 = vmatpush1.bf16.msra.mxu0 0
        %418 = vmatprep.subr.bf16.mxu0 0
        %419 = vmatpush1.bf16.msra.mxu0 0
        %420 = vmatprep.subr.bf16.mxu0 0
        %421 = vmatpush1.bf16.msra.mxu0 0
        %422 = vmatprep.subr.bf16.mxu0 0
        %423 = vmatpush1.bf16.msra.mxu0 0
        %424 = vmatprep.subr.bf16.mxu0 0
        %425 = vmatpush1.bf16.msra.mxu0 0
        %426 = vmatprep.subr.bf16.mxu0 0
        %427 = vmatpush1.bf16.msra.mxu0 0
        %428 = vmatprep.mubr.bf16.mxu0 0
        %429 = vmatmul.mubr.bf16.gmra.mrb[0].mxu0 %v391
        %v430 = vpop.f32.mrb[0].mxu0
        %v431 = vadd.f32 0.0, %v430
        %v432 = vpop.f32.mrb[0].mxu0
        %v433 = vpop.f32.mrb[0].mxu0
        %v434 = vadd.f32 0.0, %v433
        %v435 = vpop.f32.mrb[0].mxu0
        %436 = vmatprep.mubr.bf16.mxu0 0
        %437 = vmatmul.mubr.bf16.gmra.mrb[0].mxu0 %v394
        %v438 = vpop.f32.mrb[0].mxu0
        %v439 = vadd.f32 0.0, %v438
        %v440 = vpop.f32.mrb[0].mxu0
        %v441 = vpop.f32.mrb[0].mxu0
        %v442 = vadd.f32 0.0, %v441
        %v443 = vpop.f32.mrb[0].mxu0
        %444 = vdwg.mxu0
        %v445 = vld [vmem:[%s338] sm:$0x3]
        %v446 = vld [vmem:[%s338 + $0x2] sm:$0x3]
        %v447 = vld [vmem:[%s338 + $0x4] sm:$0x3]
        %v448 = vld [vmem:[%s338 + $0x6] sm:$0x3]
        %vm449 = vnez %v445
        %vm450 = vnez %v446
        %vm451 = vnez %v447
        %vm452 = vnez %v448
        %v453 = vsel %vm449, 16843009, 0
        %v454 = vsel %vm450, 16843009, 0
        %v455 = vsel %vm451, 16843009, 0
        %v456 = vsel %vm452, 16843009, 0
        %v457 = vunpack.c.0.s8 %v453
        %v458 = vunpack.c.0.s8 %v454
        %v459 = vunpack.c.0.s8 %v455
        %v460 = vunpack.c.0.s8 %v456
        %vm461 = vcmp.ne.s32.totalorder %v457, 0
        %vm462 = vcmp.ne.s32.totalorder %v458, 0
        %vm463 = vcmp.ne.s32.totalorder %v459, 0
        %vm464 = vcmp.ne.s32.totalorder %v460, 0
        %v465 = vsel %vm461, -1e+30, %v431
        %v466 = vsel %vm462, -1e+30, %v434
        %v467 = vsel %vm463, -1e+30, %v439
        %v468 = vsel %vm464, -1e+30, %v442
        %vm469 = vcmask 64512
        %v470 = vsel %vm469, %v465, -inf
        %471 = vmax.xlane.f32.xlu0 %v470
        %v472 = vpop.xlane.xlu0 %471
        %v473 = vsel %vm469, %v466, -inf
        %474 = vmax.xlane.f32.xlu0 %v473
        %v475 = vpop.xlane.xlu0 %474
        %v476 = vsel %vm469, %v467, -inf
        %477 = vmax.xlane.f32.xlu0 %v476
        %v478 = vpop.xlane.xlu0 %477
        %v479 = vsel %vm469, %v468, -inf
        %480 = vmax.xlane.f32.xlu0 %v479
        %v481 = vpop.xlane.xlu0 %480
        %v482 = vsub.f32 %v465, %v472
        %v483 = vsub.f32 %v466, %v475
        %v484 = vsub.f32 %v467, %v478
        %v485 = vsub.f32 %v468, %v481
        %v486 = vmul.f32 %v482, 1.442695
        %v487 = vpow.pop %v486
        %v488 = vmul.f32 %v483, 1.442695
        %v489 = vpow.pop %v488
        %v490 = vmul.f32 %v484, 1.442695
        %v491 = vpow.pop %v490
        %v492 = vmul.f32 %v485, 1.442695
        %v493 = vpow.pop %v492
        %v494 = vsel %vm469, %v487, 0.0
        %495 = vadd.xlane.f32.xlu0 %v494
        %v496 = vpop.xlane.xlu0 %495
        %v497 = vsel %vm469, %v489, 0.0
        %498 = vadd.xlane.f32.xlu0 %v497
        %v499 = vpop.xlane.xlu0 %498
        %v500 = vsel %vm469, %v491, 0.0
        %501 = vadd.xlane.f32.xlu0 %v500
        %v502 = vpop.xlane.xlu0 %501
        %v503 = vsel %vm469, %v493, 0.0
        %504 = vadd.xlane.f32.xlu0 %v503
        %v505 = vpop.xlane.xlu0 %504
        %v506 = vrcp.pop %v496
        %v507 = vrcp.pop %v499
        %v508 = vrcp.pop %v502
        %v509 = vrcp.pop %v505
        %v510 = vmul.f32 %v487, %v506
        %v511 = vmul.f32 %v489, %v507
        %v512 = vmul.f32 %v491, %v508
        %v513 = vmul.f32 %v493, %v509
        %vm514 = vcmp.le.f32.partialorder %v472, -5e+29
        %vm515 = vcmp.le.f32.partialorder %v475, -5e+29
        %vm516 = vcmp.le.f32.partialorder %v478, -5e+29
        %vm517 = vcmp.le.f32.partialorder %v481, -5e+29
        %v518 = vsel %vm514, 1, 0
        %v519 = vsel %vm515, 1, 0
        %v520 = vsel %vm516, 1, 0
        %v521 = vsel %vm517, 1, 0
        %vm522 = vcmp.eq.s32.totalorder %v518, 1
        %vm523 = vcmp.eq.s32.totalorder %v519, 1
        %vm524 = vcmp.eq.s32.totalorder %v520, 1
        %vm525 = vcmp.eq.s32.totalorder %v521, 1
        %v526 = vsel %vm522, 0.0, %v510
        %v527 = vsel %vm523, 0.0, %v511
        %v528 = vsel %vm524, 0.0, %v512
        %v529 = vsel %vm525, 0.0, %v513
        %v530 = vpack.c.bf16 %v527, %v526
        %v531 = vpack.c.bf16 %v529, %v528
        %v534 = vunpack.c.l.b16 %v530
        %v535 = vunpack.c.h.b16 %v530
        %v536 = vunpack.c.l.b16 %v531
        %v537 = vunpack.c.h.b16 %v531
        %v538 = vpack.c.b16 %v534, %v534
        %v539 = vpack.c.b16 %v535, %v535
        %v540 = vpack.c.b16 %v536, %v536
        %v541 = vpack.c.b16 %v537, %v537
        %vm546 = vcmask 60416
        %547 = vst.msk [vmem:[%s349] sm:$0xf] %vm546, %v538
        %548 = vst.msk [vmem:[%s349 + $0x4] sm:$0xf] %vm546, %v539
        %549 = vst.msk [vmem:[%s349 + $0x8] sm:$0xf] %vm546, %v540
        %550 = vst.msk [vmem:[%s349 + $0xc] sm:$0xf] %vm546, %v541
        %v551 = vld [vmem:[%s329] sm:$0xf]
        %v553 = vsel %vm469, %v530, 0
        %v556 = vsel %vm469, %v531, 0
        %vm558 = vcmask 1043456
        %v560 = vsel %vm558, %v551, 0
        %562 = vmatprep.subr.bf16.mxu0 0
        %563 = vmatpush1.bf16.msra.mxu0 %v560
        %564 = vmatprep.subr.bf16.mxu0 0
        %565 = vmatpush1.bf16.msra.mxu0 0
        %566 = vmatprep.subr.bf16.mxu0 0
        %567 = vmatpush1.bf16.msra.mxu0 0
        %568 = vmatprep.subr.bf16.mxu0 0
        %569 = vmatpush1.bf16.msra.mxu0 0
        %570 = vmatprep.subr.bf16.mxu0 0
        %571 = vmatpush1.bf16.msra.mxu0 0
        %572 = vmatprep.subr.bf16.mxu0 0
        %573 = vmatpush1.bf16.msra.mxu0 0
        %574 = vmatprep.subr.bf16.mxu0 0
        %575 = vmatpush1.bf16.msra.mxu0 0
        %576 = vmatprep.subr.bf16.mxu0 0
        %577 = vmatpush1.bf16.msra.mxu0 0
        %578 = vmatprep.subr.bf16.mxu0 0
        %579 = vmatpush1.bf16.msra.mxu0 0
        %580 = vmatprep.subr.bf16.mxu0 0
        %581 = vmatpush1.bf16.msra.mxu0 0
        %582 = vmatprep.subr.bf16.mxu0 0
        %583 = vmatpush1.bf16.msra.mxu0 0
        %584 = vmatprep.subr.bf16.mxu0 0
        %585 = vmatpush1.bf16.msra.mxu0 0
        %586 = vmatprep.subr.bf16.mxu0 0
        %587 = vmatpush1.bf16.msra.mxu0 0
        %588 = vmatprep.subr.bf16.mxu0 0
        %589 = vmatpush1.bf16.msra.mxu0 0
        %590 = vmatprep.subr.bf16.mxu0 0
        %591 = vmatpush1.bf16.msra.mxu0 0
        %592 = vmatprep.subr.bf16.mxu0 0
        %593 = vmatpush1.bf16.msra.mxu0 0
        %594 = vmatprep.mubr.bf16.mxu0 0
        %595 = vmatmul.mubr.bf16.gmra.mrb[0].mxu0 %v553
        %v596 = vpop.f32.mrb[0].mxu0
        %v597 = vadd.f32 0.0, %v596
        %v598 = vpop.f32.mrb[0].mxu0
        %v599 = vpop.f32.mrb[0].mxu0
        %v600 = vadd.f32 0.0, %v599
        %v601 = vpop.f32.mrb[0].mxu0
        %602 = vmatprep.mubr.bf16.mxu0 0
        %603 = vmatmul.mubr.bf16.gmra.mrb[0].mxu0 %v556
        %v604 = vpop.f32.mrb[0].mxu0
        %v605 = vadd.f32 0.0, %v604
        %v606 = vpop.f32.mrb[0].mxu0
        %v607 = vpop.f32.mrb[0].mxu0
        %v608 = vadd.f32 0.0, %v607
        %v609 = vpop.f32.mrb[0].mxu0
        %610 = vdwg.mxu0
        %611 = vst.msk [vmem:[%s299] sm:$0xff] %vm389, %v597
        %612 = vst.msk [vmem:[%s299 + $0x8] sm:$0xff] %vm389, %v600
        %613 = vst.msk [vmem:[%s299 + $0x10] sm:$0xff] %vm389, %v605
        %614 = vst.msk [vmem:[%s299 + $0x18] sm:$0xff] %vm389, %v608
        %s615 = sand.u32 %s150, 1
        %s616 = scalar_lea.sflag [#allocation3], %s615
        %s617 = sand.u32 %s150, 1
        %s618 = smul.addr %s617, 32
        %s619 = scalar_lea.vmem [#allocation2], %s618
        %s620 = smul.u32 4, %s25
        %p621 = scmp.lt.s32.totalorder %s24, 1
        %s622 = scalar_select %p621, %s24, 1
        %p623 = scmp.lt.s32.totalorder %s620, 3
        %s624 = scalar_select %p623, %s620, 3
        %s625 = smul.addr %s622, 4
        %s626 = sadd.s32 %s624, %s625
        %s627 = smul.addr %s626, 4
        %s628 = scalar_lea.vmem %s5, %s627
        // Predicated region
        $region37: #{tpu_custom_call.1} parent=35 // pred_check
          %p629 = pneg %p160
        $region38: #{tpu_custom_call.1} parent=35 // pred_check_branch
          %631 = sbr.rel (%p629) target = $region40
        $region39: #{tpu_custom_call.1} parent=35 // pred_region
          %s632 = smul.u32 4, %s25
          %s634 = ssub.s32 512, 512
          %635 = vsyncadd %s616, %s634
          %s636 = smul.addr %s24, 4
          %s637 = sadd.s32 %s632, %s636
          %s638 = smul.addr %s637, 128
          %s639 = scalar_lea.hbm %s4, %s638
          %s640 = sshll.u32 %s619, 4
          %s641 = int_to_ptr.vmem [resolvable:$true] %s640
          %646 = dma.vmem_to_hbm [thread:$0]  %s641, 512, %s639, %s616, 128, 128, 8
        $region40: #{tpu_custom_call.1} parent=35 // pred_fallthru
          _
        // Predicated region
        $region41: #{tpu_custom_call.1} parent=35 // pred_check
          %p647 = pneg %p188
        $region42: #{tpu_custom_call.1} parent=35 // pred_check_branch
          %649 = sbr.rel (%p647) target = $region44
        $region43: #{tpu_custom_call.1} parent=35 // pred_region
          %s650 = smul.u32 4, %s25
        $region44: #{tpu_custom_call.1} parent=35 // pred_fallthru
          _
      $region36: #{tpu_custom_call.1} parent=5 // pred_fallthru
        _
      %p651 = scmp.le.s32.totalorder 2, %s15
      // Predicated region
      $region45: #{tpu_custom_call.1} parent=5 // pred_check
        %p652 = pneg %p651
      $region46: #{tpu_custom_call.1} parent=5 // pred_check_branch
        %654 = sbr.rel (%p652) target = $region48
      $region47: #{tpu_custom_call.1} parent=5 // pred_region
        %s655 = ssub.s32 %s15, 2
        // Predicated region
        $region49: #{tpu_custom_call.1} parent=47 // pred_check
          %p656 = pneg %p166
        $region50: #{tpu_custom_call.1} parent=47 // pred_check_branch
          %658 = sbr.rel (%p656) target = $region52
        $region51: #{tpu_custom_call.1} parent=47 // pred_region
          %s659 = sand.u32 %s151, 1
          %s660 = scalar_lea.sflag [#allocation3], %s659
          %s661 = sand.u32 %s151, 1
          %s662 = smul.addr %s661, 32
          %s663 = scalar_lea.vmem [#allocation2], %s662
          %664 = dma.done %s660, 512
        $region52: #{tpu_custom_call.1} parent=47 // pred_fallthru
          _
        // Predicated region
        $region53: #{tpu_custom_call.1} parent=47 // pred_check
          %p665 = pneg %p194
        $region54: #{tpu_custom_call.1} parent=47 // pred_check_branch
          %667 = sbr.rel (%p665) target = $region56
        $region55: #{tpu_custom_call.1} parent=47 // pred_region
          %s668 = smul.u32 4, %s27
          %p669 = scmp.lt.s32.totalorder %s26, 1
          %s670 = scalar_select %p669, %s26, 1
          %p671 = scmp.lt.s32.totalorder %s668, 3
          %s672 = scalar_select %p671, %s668, 3
          %s673 = smul.addr %s670, 4
          %s674 = sadd.s32 %s672, %s673
          %s675 = smul.addr %s674, 4
          %s676 = scalar_lea.vmem %s5, %s675
        $region56: #{tpu_custom_call.1} parent=47 // pred_fallthru
          _
      $region48: #{tpu_custom_call.1} parent=5 // pred_fallthru
        _
    $region6: #{tpu_custom_call.1} parent=1 // loop_footer
      %s19 = sadd.s32 1, %s15
    $region7: #{tpu_custom_call.1} parent=1 // loop_footer_branch
      %14 = sbr.rel target = $region3
    $region8: #{tpu_custom_call.1} parent=1 // loop_exit
      _
    %677 = vsyncpa [#allocation3], 1
    %s678 = scalar_lea.sflag [#allocation3], 1
    %679 = vsyncpa %s678, 1

</llo_original>
